<compile_context>
chip_gen: v7x
topology: tpu7x:2x2x1
jax: 0.10.0
libtpu: 0.0.40
codegen_flags: <defaults>
</compile_context>

<pallas_src>
import jax
import jax.numpy as jnp
from jax.experimental import pallas as pl
from jax.experimental.pallas import tpu as pltpu


def _make_defect_head_kernel(TB):
    """Build the head kernel closed over the static rows-per-step count TB."""

    def kernel(idx_ref,       # SMEM  int32[NP]    flat row ids (scalar prefetch)
               hid_hbm,       # ANY   f32[B*S, H]  stays in HBM; manual row gather
               labels_ref,    # VMEM  int32[TB, 1] per-row labels for this step
               w_ref,         # VMEM  f32[H, 2]    classifier weight (resident)
               b_ref,         # VMEM  f32[1, 2]    classifier bias   (resident)
               out_ref,       # VMEM  f32[TB, 128] packed output: [p0, p1, nll, 0...]
               gbuf,          # VMEM  f32[TB, H]   gathered-rows scratch
               sems):         # DMA sems (TB,)
        t = pl.program_id(0)
        base = t * TB

        # --- Manual row gather: TB independent DMAs HBM -> VMEM scratch. ---
        # (w/b are auto-pipelined resident operands; nothing re-copies them.)
        copies = []
        for i in range(TB):                       # TB is static -> unrolled
            row = idx_ref[base + i]
            cp = pltpu.make_async_copy(hid_hbm.at[pl.ds(row, 1), :],
                                       gbuf.at[pl.ds(i, 1), :],
                                       sems.at[i])
            cp.start()
            copies.append(cp)
        for cp in copies:
            cp.wait()

        vec = gbuf[...]                                            # (TB, H)

        # --- Batched classifier: logits = vec @ W + b. ---
        logits = jnp.dot(vec, w_ref[...],
                         preferred_element_type=jnp.float32) + b_ref[...]   # (TB, 2)

        # --- Softmax over the 2 classes (vectorized over TB rows). ---
        m = jnp.max(logits, axis=-1, keepdims=True)                # (TB, 1)
        e = jnp.exp(logits - m)
        denom = jnp.sum(e, axis=-1, keepdims=True)                 # (TB, 1)
        prob = e / denom                                           # (TB, 2)

        # --- Per-example cross-entropy (PyTorch nn.CrossEntropyLoss on logits). ---
        lse = m + jnp.log(denom)                                   # (TB, 1)
        labels = labels_ref[...]                                   # (TB, 1) int32
        cls = jax.lax.broadcasted_iota(jnp.int32, (TB, 2), 1)
        onehot = (cls == labels).astype(jnp.float32)
        nll = lse - jnp.sum(onehot * logits, axis=-1, keepdims=True)   # (TB, 1)

        # --- Lane-dense packed output: lane 0/1 = prob, lane 2 = nll. ---
        lane = jax.lax.broadcasted_iota(jnp.int32, (TB, 128), 1)
        slab = jnp.where(lane == 0, prob[:, 0:1],
               jnp.where(lane == 1, prob[:, 1:2],
               jnp.where(lane == 2, nll, jnp.float32(0.0))))
        out_ref[...] = slab

    return kernel


def defect_head(hidden, last_idx, w, b, labels):
    """hidden: [B, S, H] f32; last_idx: [B] int32 (last <eos> position);
    w: [H, 2]; b: [2]; labels: [B] int32.  Returns (prob [B,2], loss scalar)."""
    B, S, H = hidden.shape
    hidden2d = hidden.reshape(B * S, H).astype(jnp.float32)

    # Rows per grid step: multiple of 8 (f32 sublane), capped at 32 so the
    # unrolled DMA-issue loop and semaphore array stay small.  For small B
    # this collapses the whole head into a single grid step.
    B_pad = ((B + 7) // 8) * 8
    TB = min(B_pad, 32)
    NT = -(-B_pad // TB)           # ceil(B_pad / TB)
    NP = NT * TB
    pad = NP - B

    flat_idx = (jnp.arange(B, dtype=jnp.int32) * S
                + last_idx.astype(jnp.int32))                 # row index into hidden2d
    # Padding rows alias row 0 (a valid row) so padded DMAs never go OOB and
    # padded lanes stay finite; they are sliced off in the wrapper.
    flat_idx_p = jnp.pad(flat_idx, (0, pad))
    labels_p = jnp.pad(labels.reshape(B).astype(jnp.int32), (0, pad)).reshape(NP, 1)
    b2d = b.reshape(1, 2).astype(jnp.float32)

    packed = pl.pallas_call(
        _make_defect_head_kernel(TB),
        out_shape=jax.ShapeDtypeStruct((NP, 128), jnp.float32),
        grid_spec=pltpu.PrefetchScalarGridSpec(
            num_scalar_prefetch=1,                 # flat row indices -> SMEM
            grid=(NT,),
            in_specs=[
                pl.BlockSpec(memory_space=pl.ANY),                 # hidden2d stays in HBM
                pl.BlockSpec((TB, 1), lambda t, idx: (t, 0)),      # labels tile
                pl.BlockSpec((H, 2), lambda t, idx: (0, 0)),       # W (resident)
                pl.BlockSpec((1, 2), lambda t, idx: (0, 0)),       # b (resident)
            ],
            out_specs=pl.BlockSpec((TB, 128), lambda t, idx: (t, 0)),
            scratch_shapes=[pltpu.VMEM((TB, H), jnp.float32),
                            pltpu.SemaphoreType.DMA((TB,))],
        ),
        compiler_params=pltpu.CompilerParams(
            dimension_semantics=("parallel",)),    # independent steps; 2 TCs on v7x
    )(flat_idx_p, hidden2d, labels_p, w.astype(jnp.float32), b2d)

    prob = packed[:B, 0:2]
    nll = packed[:B, 2]
    # Mean over B per-example NLLs (trivial; kept outside the kernel so the
    # batch grid axis stays "parallel").
    loss = jnp.mean(nll)
    return prob, loss


def init_params(key, vocab_size, hidden_size):
    k1, k2, k3, k4, k5 = jax.random.split(key, 5)
    return {
        # Encoder stand-in parameters (deterministic).
        "embed": 0.02 * jax.random.normal(k1, (vocab_size, hidden_size), jnp.float32),
        "w_enc": 0.1 * jax.random.normal(k2, (hidden_size, hidden_size), jnp.float32),
        "b_enc": 0.01 * jax.random.normal(k3, (hidden_size,), jnp.float32),
        # Classifier nn.Linear(hidden_size, 2): weight stored as [H, 2].
        "w_cls": 0.1 * jax.random.normal(k4, (hidden_size, 2), jnp.float32),
        "b_cls": 0.01 * jax.random.normal(k5, (2,), jnp.float32),
    }


def defect_model_forward(params, source_ids, labels=None, *,
                         block_size, pad_token_id, eos_token_id):
    # forward(): source_ids.view(-1, block_size)
    source_ids = source_ids.reshape(-1, block_size)
    B, S = source_ids.shape

    # model_type == 't5' path (get_t5_vec), with the encoder replaced by a
    # deterministic stand-in producing decoder_hidden_states[-1]: [B, S, H].
    attention_mask = (source_ids != pad_token_id)  # parity with PyTorch; stand-in ignores it
    del attention_mask
    hidden = jnp.tanh(params["embed"][source_ids] @ params["w_enc"]
                      + params["b_enc"])           # [B, S, H]

    eos_mask = (source_ids == eos_token_id)
    counts = eos_mask.sum(axis=1)
    try:
        if int(jnp.max(counts)) != int(jnp.min(counts)):
            raise ValueError("All examples must have the same number of <eos> tokens.")
    except (jax.errors.ConcretizationTypeError,
            jax.errors.TracerIntegerConversionError):
        # TODO(synk): the eager PyTorch ValueError check needs concrete values;
        # it is skipped when tracing under jax.jit.
        pass

    # Last <eos> position per example (computed here, not in the kernel).
    pos = jnp.arange(S, dtype=jnp.int32)[None, :]
    last = jnp.max(jnp.where(eos_mask, pos, -1), axis=1)      # [B], -1 if no <eos>
    # Zero-<eos> examples fall back to position 0 (PyTorch would error).
    last = jnp.maximum(last, 0).astype(jnp.int32)

    if labels is None:
        dummy = jnp.zeros((B,), jnp.int32)
        prob, _ = defect_head(hidden, last, params["w_cls"], params["b_cls"], dummy)
        return prob
    prob, loss = defect_head(hidden, last, params["w_cls"], params["b_cls"], labels)
    return loss, prob


if __name__ == "__main__":
    # Small, deterministic example shapes consistent with the module.
    batch = 2
    block_size = 8          # args.block_size / sequence length
    hidden_size = 32        # config.hidden_size
    vocab_size = 32
    pad_token_id = 0
    eos_token_id = 2

    key = jax.random.PRNGKey(0)
    k_params, k_ids, k_labels = jax.random.split(key, 3)

    params = init_params(k_params, vocab_size, hidden_size)

    # source_ids: random tokens in [3, vocab), exactly one <eos> per example.
    source_ids = jax.random.randint(k_ids, (batch, block_size), 3, vocab_size,
                                    dtype=jnp.int32)
    source_ids = source_ids.at[0, 5].set(eos_token_id)
    source_ids = source_ids.at[1, 7].set(eos_token_id)

    labels = jax.random.randint(k_labels, (batch,), 0, 2, dtype=jnp.int32)

    loss, prob = defect_model_forward(
        params, source_ids, labels,
        block_size=block_size, pad_token_id=pad_token_id,
        eos_token_id=eos_token_id)
    jax.block_until_ready((loss, prob))

    # Pure-JAX reference check of the head semantics.
    hidden = jnp.tanh(params["embed"][source_ids] @ params["w_enc"] + params["b_enc"])
    last_eos = jnp.argmax(jnp.where(source_ids == eos_token_id,
                                    jnp.arange(block_size)[None, :], -1), axis=1)
    vec_ref = hidden[jnp.arange(batch), last_eos, :]
    logits_ref = vec_ref @ params["w_cls"] + params["b_cls"]
    prob_ref = jax.nn.softmax(logits_ref, axis=-1)
    loss_ref = -jnp.mean(jax.nn.log_softmax(logits_ref)[jnp.arange(batch), labels])
    assert jnp.allclose(prob, prob_ref, atol=1e-5), (prob, prob_ref)
    assert jnp.allclose(loss, loss_ref, atol=1e-5), (loss, loss_ref)

    # Also exercise the inference (labels=None) path once.
    prob_only = defect_model_forward(
        params, source_ids, None,
        block_size=block_size, pad_token_id=pad_token_id,
        eos_token_id=eos_token_id)
    jax.block_until_ready(prob_only)
    assert jnp.allclose(prob_only, prob_ref, atol=1e-5), (prob_only, prob_ref)

    print("KERNEL_OK")
</pallas_src>

<mosaic_0001>
module attributes {stable_mosaic.version = 11 : i64} {
  func.func @kernel(%arg0: i32, %arg1: memref<8xi32, #tpu.memory_space<smem>>, %arg2: memref<16x32xf32, #tpu.memory_space<any>>, %arg3: memref<8x1xi32, #tpu.memory_space<vmem>>, %arg4: memref<32x2xf32, #tpu.memory_space<vmem>>, %arg5: memref<1x2xf32, #tpu.memory_space<vmem>>, %arg6: memref<8x128xf32, #tpu.memory_space<vmem>>, %arg7: memref<8x32xf32, #tpu.memory_space<vmem>>, %arg8: memref<8x!tpu.dma_semaphore, #tpu.memory_space<semaphore_mem>>) attributes {dimension_semantics = [#tpu.dimension_semantics<parallel>], iteration_bounds = array<i64: 1>, scalar_prefetch = 1 : i64, scratch_operands = 2 : i64, tpu.core_type = #tpu.core_type<tc>, window_params = [{}, {transform_indices = @transform_1, window_bounds = array<i64: 8, 1>}, {pipeline_mode = #tpu.pipeline_mode<synchronous>, transform_indices = @transform_2, window_bounds = array<i64: 32, 2>}, {pipeline_mode = #tpu.pipeline_mode<synchronous>, transform_indices = @transform_3, window_bounds = array<i64: 1, 2>}, {transform_indices = @transform_4, window_bounds = array<i64: 8, 128>}]} {
    %c8_i32 = arith.constant 8 : i32
    %0 = arith.muli %arg0, %c8_i32 : i32
    %c0_i32 = arith.constant 0 : i32
    %1 = arith.addi %0, %c0_i32 : i32
    %2 = arith.index_cast %1 : i32 to index
    %3 = memref.load %arg1[%2] : memref<8xi32, #tpu.memory_space<smem>>
    %c0_i32_0 = arith.constant 0 : i32
    %c0_i32_1 = arith.constant 0 : i32
    %4 = tpu.memref_slice %arg2[%3, %c0_i32_1] : memref<16x32xf32, #tpu.memory_space<any>> -> memref<1x32xf32, #tpu.memory_space<any>>
    %c0_i32_2 = arith.constant 0 : i32
    %c0_i32_3 = arith.constant 0 : i32
    %5 = tpu.memref_slice %arg7[%c0_i32_2, %c0_i32_3] : memref<8x32xf32, #tpu.memory_space<vmem>> -> memref<1x32xf32, #tpu.memory_space<vmem>>
    %6 = tpu.memref_slice %arg8[%c0_i32_0] : memref<8x!tpu.dma_semaphore, #tpu.memory_space<semaphore_mem>> -> memref<1x!tpu.dma_semaphore, #tpu.memory_space<semaphore_mem>>
    %7 = tpu.memref_squeeze %6 : memref<1x!tpu.dma_semaphore, #tpu.memory_space<semaphore_mem>> -> memref<!tpu.dma_semaphore, #tpu.memory_space<semaphore_mem>>
    tpu.enqueue_dma source(%4 : memref<1x32xf32, #tpu.memory_space<any>>) target(%5 : memref<1x32xf32, #tpu.memory_space<vmem>>) target_semaphore(%7 : memref<!tpu.dma_semaphore, #tpu.memory_space<semaphore_mem>>)
    %c1_i32 = arith.constant 1 : i32
    %8 = arith.addi %0, %c1_i32 : i32
    %9 = arith.index_cast %8 : i32 to index
    %10 = memref.load %arg1[%9] : memref<8xi32, #tpu.memory_space<smem>>
    %c1_i32_4 = arith.constant 1 : i32
    %c0_i32_5 = arith.constant 0 : i32
    %11 = tpu.memref_slice %arg2[%10, %c0_i32_5] : memref<16x32xf32, #tpu.memory_space<any>> -> memref<1x32xf32, #tpu.memory_space<any>>
    %c1_i32_6 = arith.constant 1 : i32
    %c0_i32_7 = arith.constant 0 : i32
    %12 = tpu.memref_slice %arg7[%c1_i32_6, %c0_i32_7] : memref<8x32xf32, #tpu.memory_space<vmem>> -> memref<1x32xf32, #tpu.memory_space<vmem>>
    %13 = tpu.memref_slice %arg8[%c1_i32_4] : memref<8x!tpu.dma_semaphore, #tpu.memory_space<semaphore_mem>> -> memref<1x!tpu.dma_semaphore, #tpu.memory_space<semaphore_mem>>
    %14 = tpu.memref_squeeze %13 : memref<1x!tpu.dma_semaphore, #tpu.memory_space<semaphore_mem>> -> memref<!tpu.dma_semaphore, #tpu.memory_space<semaphore_mem>>
    tpu.enqueue_dma source(%11 : memref<1x32xf32, #tpu.memory_space<any>>) target(%12 : memref<1x32xf32, #tpu.memory_space<vmem>>) target_semaphore(%14 : memref<!tpu.dma_semaphore, #tpu.memory_space<semaphore_mem>>)
    %c2_i32 = arith.constant 2 : i32
    %15 = arith.addi %0, %c2_i32 : i32
    %16 = arith.index_cast %15 : i32 to index
    %17 = memref.load %arg1[%16] : memref<8xi32, #tpu.memory_space<smem>>
    %c2_i32_8 = arith.constant 2 : i32
    %c0_i32_9 = arith.constant 0 : i32
    %18 = tpu.memref_slice %arg2[%17, %c0_i32_9] : memref<16x32xf32, #tpu.memory_space<any>> -> memref<1x32xf32, #tpu.memory_space<any>>
    %c2_i32_10 = arith.constant 2 : i32
    %c0_i32_11 = arith.constant 0 : i32
    %19 = tpu.memref_slice %arg7[%c2_i32_10, %c0_i32_11] : memref<8x32xf32, #tpu.memory_space<vmem>> -> memref<1x32xf32, #tpu.memory_space<vmem>>
    %20 = tpu.memref_slice %arg8[%c2_i32_8] : memref<8x!tpu.dma_semaphore, #tpu.memory_space<semaphore_mem>> -> memref<1x!tpu.dma_semaphore, #tpu.memory_space<semaphore_mem>>
    %21 = tpu.memref_squeeze %20 : memref<1x!tpu.dma_semaphore, #tpu.memory_space<semaphore_mem>> -> memref<!tpu.dma_semaphore, #tpu.memory_space<semaphore_mem>>
    tpu.enqueue_dma source(%18 : memref<1x32xf32, #tpu.memory_space<any>>) target(%19 : memref<1x32xf32, #tpu.memory_space<vmem>>) target_semaphore(%21 : memref<!tpu.dma_semaphore, #tpu.memory_space<semaphore_mem>>)
    %c3_i32 = arith.constant 3 : i32
    %22 = arith.addi %0, %c3_i32 : i32
    %23 = arith.index_cast %22 : i32 to index
    %24 = memref.load %arg1[%23] : memref<8xi32, #tpu.memory_space<smem>>
    %c3_i32_12 = arith.constant 3 : i32
    %c0_i32_13 = arith.constant 0 : i32
    %25 = tpu.memref_slice %arg2[%24, %c0_i32_13] : memref<16x32xf32, #tpu.memory_space<any>> -> memref<1x32xf32, #tpu.memory_space<any>>
    %c3_i32_14 = arith.constant 3 : i32
    %c0_i32_15 = arith.constant 0 : i32
    %26 = tpu.memref_slice %arg7[%c3_i32_14, %c0_i32_15] : memref<8x32xf32, #tpu.memory_space<vmem>> -> memref<1x32xf32, #tpu.memory_space<vmem>>
    %27 = tpu.memref_slice %arg8[%c3_i32_12] : memref<8x!tpu.dma_semaphore, #tpu.memory_space<semaphore_mem>> -> memref<1x!tpu.dma_semaphore, #tpu.memory_space<semaphore_mem>>
    %28 = tpu.memref_squeeze %27 : memref<1x!tpu.dma_semaphore, #tpu.memory_space<semaphore_mem>> -> memref<!tpu.dma_semaphore, #tpu.memory_space<semaphore_mem>>
    tpu.enqueue_dma source(%25 : memref<1x32xf32, #tpu.memory_space<any>>) target(%26 : memref<1x32xf32, #tpu.memory_space<vmem>>) target_semaphore(%28 : memref<!tpu.dma_semaphore, #tpu.memory_space<semaphore_mem>>)
    %c4_i32 = arith.constant 4 : i32
    %29 = arith.addi %0, %c4_i32 : i32
    %30 = arith.index_cast %29 : i32 to index
    %31 = memref.load %arg1[%30] : memref<8xi32, #tpu.memory_space<smem>>
    %c4_i32_16 = arith.constant 4 : i32
    %c0_i32_17 = arith.constant 0 : i32
    %32 = tpu.memref_slice %arg2[%31, %c0_i32_17] : memref<16x32xf32, #tpu.memory_space<any>> -> memref<1x32xf32, #tpu.memory_space<any>>
    %c4_i32_18 = arith.constant 4 : i32
    %c0_i32_19 = arith.constant 0 : i32
    %33 = tpu.memref_slice %arg7[%c4_i32_18, %c0_i32_19] : memref<8x32xf32, #tpu.memory_space<vmem>> -> memref<1x32xf32, #tpu.memory_space<vmem>>
    %34 = tpu.memref_slice %arg8[%c4_i32_16] : memref<8x!tpu.dma_semaphore, #tpu.memory_space<semaphore_mem>> -> memref<1x!tpu.dma_semaphore, #tpu.memory_space<semaphore_mem>>
    %35 = tpu.memref_squeeze %34 : memref<1x!tpu.dma_semaphore, #tpu.memory_space<semaphore_mem>> -> memref<!tpu.dma_semaphore, #tpu.memory_space<semaphore_mem>>
    tpu.enqueue_dma source(%32 : memref<1x32xf32, #tpu.memory_space<any>>) target(%33 : memref<1x32xf32, #tpu.memory_space<vmem>>) target_semaphore(%35 : memref<!tpu.dma_semaphore, #tpu.memory_space<semaphore_mem>>)
    %c5_i32 = arith.constant 5 : i32
    %36 = arith.addi %0, %c5_i32 : i32
    %37 = arith.index_cast %36 : i32 to index
    %38 = memref.load %arg1[%37] : memref<8xi32, #tpu.memory_space<smem>>
    %c5_i32_20 = arith.constant 5 : i32
    %c0_i32_21 = arith.constant 0 : i32
    %39 = tpu.memref_slice %arg2[%38, %c0_i32_21] : memref<16x32xf32, #tpu.memory_space<any>> -> memref<1x32xf32, #tpu.memory_space<any>>
    %c5_i32_22 = arith.constant 5 : i32
    %c0_i32_23 = arith.constant 0 : i32
    %40 = tpu.memref_slice %arg7[%c5_i32_22, %c0_i32_23] : memref<8x32xf32, #tpu.memory_space<vmem>> -> memref<1x32xf32, #tpu.memory_space<vmem>>
    %41 = tpu.memref_slice %arg8[%c5_i32_20] : memref<8x!tpu.dma_semaphore, #tpu.memory_space<semaphore_mem>> -> memref<1x!tpu.dma_semaphore, #tpu.memory_space<semaphore_mem>>
    %42 = tpu.memref_squeeze %41 : memref<1x!tpu.dma_semaphore, #tpu.memory_space<semaphore_mem>> -> memref<!tpu.dma_semaphore, #tpu.memory_space<semaphore_mem>>
    tpu.enqueue_dma source(%39 : memref<1x32xf32, #tpu.memory_space<any>>) target(%40 : memref<1x32xf32, #tpu.memory_space<vmem>>) target_semaphore(%42 : memref<!tpu.dma_semaphore, #tpu.memory_space<semaphore_mem>>)
    %c6_i32 = arith.constant 6 : i32
    %43 = arith.addi %0, %c6_i32 : i32
    %44 = arith.index_cast %43 : i32 to index
    %45 = memref.load %arg1[%44] : memref<8xi32, #tpu.memory_space<smem>>
    %c6_i32_24 = arith.constant 6 : i32
    %c0_i32_25 = arith.constant 0 : i32
    %46 = tpu.memref_slice %arg2[%45, %c0_i32_25] : memref<16x32xf32, #tpu.memory_space<any>> -> memref<1x32xf32, #tpu.memory_space<any>>
    %c6_i32_26 = arith.constant 6 : i32
    %c0_i32_27 = arith.constant 0 : i32
    %47 = tpu.memref_slice %arg7[%c6_i32_26, %c0_i32_27] : memref<8x32xf32, #tpu.memory_space<vmem>> -> memref<1x32xf32, #tpu.memory_space<vmem>>
    %48 = tpu.memref_slice %arg8[%c6_i32_24] : memref<8x!tpu.dma_semaphore, #tpu.memory_space<semaphore_mem>> -> memref<1x!tpu.dma_semaphore, #tpu.memory_space<semaphore_mem>>
    %49 = tpu.memref_squeeze %48 : memref<1x!tpu.dma_semaphore, #tpu.memory_space<semaphore_mem>> -> memref<!tpu.dma_semaphore, #tpu.memory_space<semaphore_mem>>
    tpu.enqueue_dma source(%46 : memref<1x32xf32, #tpu.memory_space<any>>) target(%47 : memref<1x32xf32, #tpu.memory_space<vmem>>) target_semaphore(%49 : memref<!tpu.dma_semaphore, #tpu.memory_space<semaphore_mem>>)
    %c7_i32 = arith.constant 7 : i32
    %50 = arith.addi %0, %c7_i32 : i32
    %51 = arith.index_cast %50 : i32 to index
    %52 = memref.load %arg1[%51] : memref<8xi32, #tpu.memory_space<smem>>
    %c7_i32_28 = arith.constant 7 : i32
    %c0_i32_29 = arith.constant 0 : i32
    %53 = tpu.memref_slice %arg2[%52, %c0_i32_29] : memref<16x32xf32, #tpu.memory_space<any>> -> memref<1x32xf32, #tpu.memory_space<any>>
    %c7_i32_30 = arith.constant 7 : i32
    %c0_i32_31 = arith.constant 0 : i32
    %54 = tpu.memref_slice %arg7[%c7_i32_30, %c0_i32_31] : memref<8x32xf32, #tpu.memory_space<vmem>> -> memref<1x32xf32, #tpu.memory_space<vmem>>
    %55 = tpu.memref_slice %arg8[%c7_i32_28] : memref<8x!tpu.dma_semaphore, #tpu.memory_space<semaphore_mem>> -> memref<1x!tpu.dma_semaphore, #tpu.memory_space<semaphore_mem>>
    %56 = tpu.memref_squeeze %55 : memref<1x!tpu.dma_semaphore, #tpu.memory_space<semaphore_mem>> -> memref<!tpu.dma_semaphore, #tpu.memory_space<semaphore_mem>>
    tpu.enqueue_dma source(%53 : memref<1x32xf32, #tpu.memory_space<any>>) target(%54 : memref<1x32xf32, #tpu.memory_space<vmem>>) target_semaphore(%56 : memref<!tpu.dma_semaphore, #tpu.memory_space<semaphore_mem>>)
    %c0_i32_32 = arith.constant 0 : i32
    %c0_i32_33 = arith.constant 0 : i32
    %57 = tpu.memref_slice %arg2[%3, %c0_i32_33] : memref<16x32xf32, #tpu.memory_space<any>> -> memref<1x32xf32, #tpu.memory_space<any>>
    %c0_i32_34 = arith.constant 0 : i32
    %c0_i32_35 = arith.constant 0 : i32
    %58 = tpu.memref_slice %arg7[%c0_i32_34, %c0_i32_35] : memref<8x32xf32, #tpu.memory_space<vmem>> -> memref<1x32xf32, #tpu.memory_space<vmem>>
    %59 = tpu.memref_slice %arg8[%c0_i32_32] : memref<8x!tpu.dma_semaphore, #tpu.memory_space<semaphore_mem>> -> memref<1x!tpu.dma_semaphore, #tpu.memory_space<semaphore_mem>>
    %60 = tpu.memref_squeeze %59 : memref<1x!tpu.dma_semaphore, #tpu.memory_space<semaphore_mem>> -> memref<!tpu.dma_semaphore, #tpu.memory_space<semaphore_mem>>
    tpu.wait_dma2 semaphore(%60 : memref<!tpu.dma_semaphore, #tpu.memory_space<semaphore_mem>>) src(%57 : memref<1x32xf32, #tpu.memory_space<any>>) dst(%58 : memref<1x32xf32, #tpu.memory_space<vmem>>)
    %c1_i32_36 = arith.constant 1 : i32
    %c0_i32_37 = arith.constant 0 : i32
    %61 = tpu.memref_slice %arg2[%10, %c0_i32_37] : memref<16x32xf32, #tpu.memory_space<any>> -> memref<1x32xf32, #tpu.memory_space<any>>
    %c1_i32_38 = arith.constant 1 : i32
    %c0_i32_39 = arith.constant 0 : i32
    %62 = tpu.memref_slice %arg7[%c1_i32_38, %c0_i32_39] : memref<8x32xf32, #tpu.memory_space<vmem>> -> memref<1x32xf32, #tpu.memory_space<vmem>>
    %63 = tpu.memref_slice %arg8[%c1_i32_36] : memref<8x!tpu.dma_semaphore, #tpu.memory_space<semaphore_mem>> -> memref<1x!tpu.dma_semaphore, #tpu.memory_space<semaphore_mem>>
    %64 = tpu.memref_squeeze %63 : memref<1x!tpu.dma_semaphore, #tpu.memory_space<semaphore_mem>> -> memref<!tpu.dma_semaphore, #tpu.memory_space<semaphore_mem>>
    tpu.wait_dma2 semaphore(%64 : memref<!tpu.dma_semaphore, #tpu.memory_space<semaphore_mem>>) src(%61 : memref<1x32xf32, #tpu.memory_space<any>>) dst(%62 : memref<1x32xf32, #tpu.memory_space<vmem>>)
    %c2_i32_40 = arith.constant 2 : i32
    %c0_i32_41 = arith.constant 0 : i32
    %65 = tpu.memref_slice %arg2[%17, %c0_i32_41] : memref<16x32xf32, #tpu.memory_space<any>> -> memref<1x32xf32, #tpu.memory_space<any>>
    %c2_i32_42 = arith.constant 2 : i32
    %c0_i32_43 = arith.constant 0 : i32
    %66 = tpu.memref_slice %arg7[%c2_i32_42, %c0_i32_43] : memref<8x32xf32, #tpu.memory_space<vmem>> -> memref<1x32xf32, #tpu.memory_space<vmem>>
    %67 = tpu.memref_slice %arg8[%c2_i32_40] : memref<8x!tpu.dma_semaphore, #tpu.memory_space<semaphore_mem>> -> memref<1x!tpu.dma_semaphore, #tpu.memory_space<semaphore_mem>>
    %68 = tpu.memref_squeeze %67 : memref<1x!tpu.dma_semaphore, #tpu.memory_space<semaphore_mem>> -> memref<!tpu.dma_semaphore, #tpu.memory_space<semaphore_mem>>
    tpu.wait_dma2 semaphore(%68 : memref<!tpu.dma_semaphore, #tpu.memory_space<semaphore_mem>>) src(%65 : memref<1x32xf32, #tpu.memory_space<any>>) dst(%66 : memref<1x32xf32, #tpu.memory_space<vmem>>)
    %c3_i32_44 = arith.constant 3 : i32
    %c0_i32_45 = arith.constant 0 : i32
    %69 = tpu.memref_slice %arg2[%24, %c0_i32_45] : memref<16x32xf32, #tpu.memory_space<any>> -> memref<1x32xf32, #tpu.memory_space<any>>
    %c3_i32_46 = arith.constant 3 : i32
    %c0_i32_47 = arith.constant 0 : i32
    %70 = tpu.memref_slice %arg7[%c3_i32_46, %c0_i32_47] : memref<8x32xf32, #tpu.memory_space<vmem>> -> memref<1x32xf32, #tpu.memory_space<vmem>>
    %71 = tpu.memref_slice %arg8[%c3_i32_44] : memref<8x!tpu.dma_semaphore, #tpu.memory_space<semaphore_mem>> -> memref<1x!tpu.dma_semaphore, #tpu.memory_space<semaphore_mem>>
    %72 = tpu.memref_squeeze %71 : memref<1x!tpu.dma_semaphore, #tpu.memory_space<semaphore_mem>> -> memref<!tpu.dma_semaphore, #tpu.memory_space<semaphore_mem>>
    tpu.wait_dma2 semaphore(%72 : memref<!tpu.dma_semaphore, #tpu.memory_space<semaphore_mem>>) src(%69 : memref<1x32xf32, #tpu.memory_space<any>>) dst(%70 : memref<1x32xf32, #tpu.memory_space<vmem>>)
    %c4_i32_48 = arith.constant 4 : i32
    %c0_i32_49 = arith.constant 0 : i32
    %73 = tpu.memref_slice %arg2[%31, %c0_i32_49] : memref<16x32xf32, #tpu.memory_space<any>> -> memref<1x32xf32, #tpu.memory_space<any>>
    %c4_i32_50 = arith.constant 4 : i32
    %c0_i32_51 = arith.constant 0 : i32
    %74 = tpu.memref_slice %arg7[%c4_i32_50, %c0_i32_51] : memref<8x32xf32, #tpu.memory_space<vmem>> -> memref<1x32xf32, #tpu.memory_space<vmem>>
    %75 = tpu.memref_slice %arg8[%c4_i32_48] : memref<8x!tpu.dma_semaphore, #tpu.memory_space<semaphore_mem>> -> memref<1x!tpu.dma_semaphore, #tpu.memory_space<semaphore_mem>>
    %76 = tpu.memref_squeeze %75 : memref<1x!tpu.dma_semaphore, #tpu.memory_space<semaphore_mem>> -> memref<!tpu.dma_semaphore, #tpu.memory_space<semaphore_mem>>
    tpu.wait_dma2 semaphore(%76 : memref<!tpu.dma_semaphore, #tpu.memory_space<semaphore_mem>>) src(%73 : memref<1x32xf32, #tpu.memory_space<any>>) dst(%74 : memref<1x32xf32, #tpu.memory_space<vmem>>)
    %c5_i32_52 = arith.constant 5 : i32
    %c0_i32_53 = arith.constant 0 : i32
    %77 = tpu.memref_slice %arg2[%38, %c0_i32_53] : memref<16x32xf32, #tpu.memory_space<any>> -> memref<1x32xf32, #tpu.memory_space<any>>
    %c5_i32_54 = arith.constant 5 : i32
    %c0_i32_55 = arith.constant 0 : i32
    %78 = tpu.memref_slice %arg7[%c5_i32_54, %c0_i32_55] : memref<8x32xf32, #tpu.memory_space<vmem>> -> memref<1x32xf32, #tpu.memory_space<vmem>>
    %79 = tpu.memref_slice %arg8[%c5_i32_52] : memref<8x!tpu.dma_semaphore, #tpu.memory_space<semaphore_mem>> -> memref<1x!tpu.dma_semaphore, #tpu.memory_space<semaphore_mem>>
    %80 = tpu.memref_squeeze %79 : memref<1x!tpu.dma_semaphore, #tpu.memory_space<semaphore_mem>> -> memref<!tpu.dma_semaphore, #tpu.memory_space<semaphore_mem>>
    tpu.wait_dma2 semaphore(%80 : memref<!tpu.dma_semaphore, #tpu.memory_space<semaphore_mem>>) src(%77 : memref<1x32xf32, #tpu.memory_space<any>>) dst(%78 : memref<1x32xf32, #tpu.memory_space<vmem>>)
    %c6_i32_56 = arith.constant 6 : i32
    %c0_i32_57 = arith.constant 0 : i32
    %81 = tpu.memref_slice %arg2[%45, %c0_i32_57] : memref<16x32xf32, #tpu.memory_space<any>> -> memref<1x32xf32, #tpu.memory_space<any>>
    %c6_i32_58 = arith.constant 6 : i32
    %c0_i32_59 = arith.constant 0 : i32
    %82 = tpu.memref_slice %arg7[%c6_i32_58, %c0_i32_59] : memref<8x32xf32, #tpu.memory_space<vmem>> -> memref<1x32xf32, #tpu.memory_space<vmem>>
    %83 = tpu.memref_slice %arg8[%c6_i32_56] : memref<8x!tpu.dma_semaphore, #tpu.memory_space<semaphore_mem>> -> memref<1x!tpu.dma_semaphore, #tpu.memory_space<semaphore_mem>>
    %84 = tpu.memref_squeeze %83 : memref<1x!tpu.dma_semaphore, #tpu.memory_space<semaphore_mem>> -> memref<!tpu.dma_semaphore, #tpu.memory_space<semaphore_mem>>
    tpu.wait_dma2 semaphore(%84 : memref<!tpu.dma_semaphore, #tpu.memory_space<semaphore_mem>>) src(%81 : memref<1x32xf32, #tpu.memory_space<any>>) dst(%82 : memref<1x32xf32, #tpu.memory_space<vmem>>)
    %c7_i32_60 = arith.constant 7 : i32
    %c0_i32_61 = arith.constant 0 : i32
    %85 = tpu.memref_slice %arg2[%52, %c0_i32_61] : memref<16x32xf32, #tpu.memory_space<any>> -> memref<1x32xf32, #tpu.memory_space<any>>
    %c7_i32_62 = arith.constant 7 : i32
    %c0_i32_63 = arith.constant 0 : i32
    %86 = tpu.memref_slice %arg7[%c7_i32_62, %c0_i32_63] : memref<8x32xf32, #tpu.memory_space<vmem>> -> memref<1x32xf32, #tpu.memory_space<vmem>>
    %87 = tpu.memref_slice %arg8[%c7_i32_60] : memref<8x!tpu.dma_semaphore, #tpu.memory_space<semaphore_mem>> -> memref<1x!tpu.dma_semaphore, #tpu.memory_space<semaphore_mem>>
    %88 = tpu.memref_squeeze %87 : memref<1x!tpu.dma_semaphore, #tpu.memory_space<semaphore_mem>> -> memref<!tpu.dma_semaphore, #tpu.memory_space<semaphore_mem>>
    tpu.wait_dma2 semaphore(%88 : memref<!tpu.dma_semaphore, #tpu.memory_space<semaphore_mem>>) src(%85 : memref<1x32xf32, #tpu.memory_space<any>>) dst(%86 : memref<1x32xf32, #tpu.memory_space<vmem>>)
    %c0 = arith.constant 0 : index
    %c0_64 = arith.constant 0 : index
    %89 = vector.load %arg7[%c0, %c0_64] : memref<8x32xf32, #tpu.memory_space<vmem>>, vector<8x32xf32>
    %c0_65 = arith.constant 0 : index
    %c0_66 = arith.constant 0 : index
    %90 = vector.load %arg4[%c0_65, %c0_66] : memref<32x2xf32, #tpu.memory_space<vmem>>, vector<32x2xf32>
    %cst = arith.constant dense<0.000000e+00> : vector<8x2xf32>
    %91 = tpu.matmul %89, %90, %cst {dimension_numbers = #tpu.dot_dimension_numbers<[1], [0], [0], [1], [0, 0, 1, 1], [], []>} : vector<8x32xf32>, vector<32x2xf32>, vector<8x2xf32> -> vector<8x2xf32>
    %c0_67 = arith.constant 0 : index
    %c0_68 = arith.constant 0 : index
    %92 = vector.load %arg5[%c0_67, %c0_68] : memref<1x2xf32, #tpu.memory_space<vmem>>, vector<1x2xf32>
    %93 = vector.broadcast %92 : vector<1x2xf32> to vector<8x2xf32>
    %94 = arith.addf %91, %93 : vector<8x2xf32>
    %cst_69 = arith.constant dense<0xFF800000> : vector<8xf32>
    %95 = vector.multi_reduction <maximumf>, %94, %cst_69 [1] : vector<8x2xf32> to vector<8xf32>
    %96 = vector.shape_cast %95 : vector<8xf32> to vector<8x1xf32>
    %97 = vector.broadcast %96 : vector<8x1xf32> to vector<8x2xf32>
    %98 = arith.subf %94, %97 : vector<8x2xf32>
    %99 = math.exp %98 : vector<8x2xf32>
    %cst_70 = arith.constant dense<0.000000e+00> : vector<8xf32>
    %100 = vector.multi_reduction <add>, %99, %cst_70 [1] : vector<8x2xf32> to vector<8xf32>
    %101 = vector.shape_cast %100 : vector<8xf32> to vector<8x1xf32>
    %102 = vector.broadcast %101 : vector<8x1xf32> to vector<8x2xf32>
    %103 = arith.divf %99, %102 : vector<8x2xf32>
    %104 = math.log %101 : vector<8x1xf32>
    %105 = arith.addf %96, %104 : vector<8x1xf32>
    %c0_71 = arith.constant 0 : index
    %c0_72 = arith.constant 0 : index
    %106 = vector.load %arg3[%c0_71, %c0_72] : memref<8x1xi32, #tpu.memory_space<vmem>>, vector<8x1xi32>
    %107 = tpu.iota {dimensions = array<i32: 1>} : vector<8x2xi32>
    %108 = vector.broadcast %106 : vector<8x1xi32> to vector<8x2xi32>
    %109 = arith.cmpi eq, %107, %108 : vector<8x2xi32>
    %110 = arith.extui %109 : vector<8x2xi1> to vector<8x2xi32>
    %111 = arith.sitofp %110 : vector<8x2xi32> to vector<8x2xf32>
    %112 = arith.mulf %111, %94 : vector<8x2xf32>
    %cst_73 = arith.constant dense<0.000000e+00> : vector<8xf32>
    %113 = vector.multi_reduction <add>, %112, %cst_73 [1] : vector<8x2xf32> to vector<8xf32>
    %114 = vector.shape_cast %113 : vector<8xf32> to vector<8x1xf32>
    %115 = arith.subf %105, %114 : vector<8x1xf32>
    %116 = tpu.iota {dimensions = array<i32: 1>} : vector<8x128xi32>
    %c0_i32_74 = arith.constant 0 : i32
    %117 = vector.broadcast %c0_i32_74 : i32 to vector<8x128xi32>
    %118 = arith.cmpi eq, %116, %117 : vector<8x128xi32>
    %119 = vector.extract_strided_slice %103 {offsets = [0, 0], sizes = [8, 1], strides = [1, 1]} : vector<8x2xf32> to vector<8x1xf32>
    %c1_i32_75 = arith.constant 1 : i32
    %120 = vector.broadcast %c1_i32_75 : i32 to vector<8x128xi32>
    %121 = arith.cmpi eq, %116, %120 : vector<8x128xi32>
    %122 = vector.extract_strided_slice %103 {offsets = [0, 1], sizes = [8, 1], strides = [1, 1]} : vector<8x2xf32> to vector<8x1xf32>
    %c2_i32_76 = arith.constant 2 : i32
    %123 = vector.broadcast %c2_i32_76 : i32 to vector<8x128xi32>
    %124 = arith.cmpi eq, %116, %123 : vector<8x128xi32>
    %cst_77 = arith.constant 0.000000e+00 : f32
    %125 = vector.shape_cast %115 : vector<8x1xf32> to vector<8x1xf32>
    %126 = vector.broadcast %125 : vector<8x1xf32> to vector<8x128xf32>
    %127 = vector.broadcast %cst_77 : f32 to vector<8x128xf32>
    %128 = arith.select %124, %126, %127 : vector<8x128xi1>, vector<8x128xf32>
    %129 = vector.shape_cast %122 : vector<8x1xf32> to vector<8x1xf32>
    %130 = vector.broadcast %129 : vector<8x1xf32> to vector<8x128xf32>
    %131 = arith.select %121, %130, %128 : vector<8x128xi1>, vector<8x128xf32>
    %132 = vector.shape_cast %119 : vector<8x1xf32> to vector<8x1xf32>
    %133 = vector.broadcast %132 : vector<8x1xf32> to vector<8x128xf32>
    %134 = arith.select %118, %133, %131 : vector<8x128xi1>, vector<8x128xf32>
    %c0_78 = arith.constant 0 : index
    %c0_79 = arith.constant 0 : index
    %135 = vector.load %arg6[%c0_78, %c0_79] : memref<8x128xf32, #tpu.memory_space<vmem>>, vector<8x128xf32>
    tpu.vector_store %arg6[%c0_78, %c0_79], %134 {strides = array<i32>} : memref<8x128xf32, #tpu.memory_space<vmem>>, vector<8x128xf32>,
    return
  }
  func.func @transform_1(%arg0: i32, %arg1: memref<8xi32, #tpu.memory_space<smem>>) -> (i32, i32) {
    %c0_i32 = arith.constant 0 : i32
    %c0_i32_0 = arith.constant 0 : i32
    return %arg0, %c0_i32 : i32, i32
  }
  func.func @transform_2(%arg0: i32, %arg1: memref<8xi32, #tpu.memory_space<smem>>) -> (i32, i32) {
    %c0_i32 = arith.constant 0 : i32
    %c0_i32_0 = arith.constant 0 : i32
    %c0_i32_1 = arith.constant 0 : i32
    return %c0_i32, %c0_i32_0 : i32, i32
  }
  func.func @transform_3(%arg0: i32, %arg1: memref<8xi32, #tpu.memory_space<smem>>) -> (i32, i32) {
    %c0_i32 = arith.constant 0 : i32
    %c0_i32_0 = arith.constant 0 : i32
    %c0_i32_1 = arith.constant 0 : i32
    return %c0_i32, %c0_i32_0 : i32, i32
  }
  func.func @transform_4(%arg0: i32, %arg1: memref<8xi32, #tpu.memory_space<smem>>) -> (i32, i32) {
    %c0_i32 = arith.constant 0 : i32
    %c0_i32_0 = arith.constant 0 : i32
    return %arg0, %c0_i32 : i32, i32
  }
}

</mosaic_0001>

<llo_original>
// kernel: tpu_custom_call.1
$region0: #{tpu_custom_call.1}
  #allocation0 [shape = 'u32[]', space=smem, size = 0x4, offset = 0x4, fixed_abs, tag = 'smem constant byte address 0x4 - core index']
  #allocation1 [shape = 'u32[144,128]{1,0:T(1,128)}', space=vmem, size = 0x12000, scoped, tag = 'internal scratch']
  #allocation2 [shape = 'f32[8,32]{1,0:T(8,128)}', space=vmem, size = 0x1000, scoped, tag = 'scratch operand']
  #allocation3 [shape = 's32[8]{0}', space=sflag, size = 0x20, scoped, tag = 'scratch operand']
  #allocation4 [shape = 's32[1]{0}', space=sflag, size = 0x4, scoped, tag = 'scoped memory for tpu_custom_call.1']
  #allocation5 [shape = 'u8[512]{0}', space=smem, size = 0x200, scoped, tag = 'prefetched SMEM operand 0']
  #allocation8 [shape = 's32[]', space=sflag, size = 0x4, offset = 0, fixed_abs, tag = 'sflag constant byte address 0x0 - dummy sync flag']
  #allocation9 [shape = 's32[]', space=sflag, size = 0x4, offset = 0, fixed_abs, tag = 'sflag constant byte address 0x0 - dummy sync flag']
  #allocation10 [shape = 's32[]', space=sflag, size = 0x4, offset = 0, fixed_abs, tag = 'sflag constant byte address 0x0 - dummy sync flag']
  #allocation11 [shape = 's32[]', space=sflag, size = 0x4, offset = 0, fixed_abs, tag = 'sflag constant byte address 0x0 - dummy sync flag']
  #allocation12 [shape = 's32[]', space=sflag, size = 0x4, offset = 0, fixed_abs, tag = 'sflag constant byte address 0x0 - dummy sync flag']
  #allocation13 [shape = 's32[]', space=sflag, size = 0x4, offset = 0, fixed_abs, tag = 'sflag constant byte address 0x0 - dummy sync flag']
  #allocation14 [shape = 's32[]', space=sflag, size = 0x4, offset = 0, fixed_abs, tag = 'sflag constant byte address 0x0 - dummy sync flag']
  #allocation15 [shape = 's32[]', space=sflag, size = 0x4, offset = 0, fixed_abs, tag = 'sflag constant byte address 0x0 - dummy sync flag']
  %s0 = inlined_call_operand.vmem [shape: s32[8], index: 0, kind: input, shape index: {}]
  %s1 = inlined_call_operand.vmem [shape: f32[16,32], index: 1, kind: input, shape index: {}]
  %s2 = inlined_call_operand.vmem [shape: s32[8,1], index: 2, kind: input, shape index: {}]
  %s3 = inlined_call_operand.vmem [shape: f32[32,2], index: 3, kind: input, shape index: {}]
  %s4 = inlined_call_operand.vmem [shape: f32[1,2], index: 4, kind: input, shape index: {}]
  %s5 = inlined_call_operand.hbm [shape: f32[8,128], index: 5, kind: output, shape index: {}]
  %s6 = sld [smem:[#allocation0]]
  $region262: #{tpu_custom_call.1} parent=0
    _
  %s8 = ssub.s32 1, %s6
  %s9 = scalar_select 0, %s8, %s6
  %s10 = sshll.u32 %s0, 4
  %s11 = int_to_ptr.vmem [resolvable:$true] %s10
  %13 = dma.vmem_to_smem %s11, 16, [#allocation5], [#allocation4]
  %14 = dma.done [#allocation4], 16
  %15 = sfence
  $region1: #{tpu_custom_call.1} parent=0
    #allocation6 [shape = 'u8[4096]{0}', space=vmem, size = 0x1000, scoped, tag = 'output window, operand 0, single buffered']
    #allocation7 [shape = 's32[1]{0}', space=sflag, size = 0x4, scoped, tag = 'scoped memory for tpu_custom_call.1']
    %16 = vsyncpa [#allocation7], 0
    // Predicated region
    $region2: #{tpu_custom_call.1} parent=1 // pred_check
      _
    $region3: #{tpu_custom_call.1} parent=1 // pred_check_branch
      %18 = sbr.rel (0) target = $region5
    $region4: #{tpu_custom_call.1} parent=1 // pred_region
      _
    $region5: #{tpu_custom_call.1} parent=1 // pred_fallthru
      _
    // Predicated region
    $region6: #{tpu_custom_call.1} parent=1 // pred_check
      _
    $region7: #{tpu_custom_call.1} parent=1 // pred_check_branch
      %20 = sbr.rel (0) target = $region9
    $region8: #{tpu_custom_call.1} parent=1 // pred_region
      _
    $region9: #{tpu_custom_call.1} parent=1 // pred_fallthru
      _
    // Predicated region
    $region10: #{tpu_custom_call.1} parent=1 // pred_check
      _
    $region11: #{tpu_custom_call.1} parent=1 // pred_check_branch
      %22 = sbr.rel (0) target = $region13
    $region12: #{tpu_custom_call.1} parent=1 // pred_region
      _
    $region13: #{tpu_custom_call.1} parent=1 // pred_fallthru
      _
    %s23 = smul.u32 0, 8
    %s24 = sld [smem:[#allocation5 + %s23]]
    %s25 = scalar_lea.vmem %s1, %s24
    %p27 = scmp.lt.u32.totalorder 1, 8
    %p28 = pneg %p27
    // Predicated region
    $region14: #{tpu_custom_call.1} parent=1 // pred_check
      _
    $region15: #{tpu_custom_call.1} parent=1 // pred_check_branch
      %30 = sbr.rel (%p27) target = $region17
    $region16: #{tpu_custom_call.1} parent=1 // pred_region
      %s45 = sand.u32 1, 7
      %p46 = scmp.eq.s32.totalorder %s45, 0
      %p47 = pneg %p46
      // Predicated region
      $region29: #{tpu_custom_call.1} parent=16 // pred_check
        _
      $region30: #{tpu_custom_call.1} parent=16 // pred_check_branch
        %49 = sbr.rel (%p46) target = $region32
      $region31: #{tpu_custom_call.1} parent=16 // pred_region
        %s50 = sand.u32 1, 7
        %s51 = ssub.s32 1, %s50
        %s52 = scalar_lea.vmem %s25, %s51
        %s53 = ssub.s32 1, %s50
        %s54 = scalar_lea.vmem [#allocation2], %s53
        %s55 = sshllo.u32 0, %s50
        loop: start=0, step=1, limit=1
        $region33: #{tpu_custom_call.1} parent=31 // loop_pre_header
          _
        $region34: #{tpu_custom_call.1} parent=31 // loop_header
          %s57 = sphi 0, %s61
          %p58 = scmp.ge.s32.totalorder %s57, 1
          %s62 = sphi %s52, %s52
          %s63 = sphi %s54, %s54
        $region35: #{tpu_custom_call.1} parent=31 // loop_header_branch
          %60 = sbr.rel (%p58) target = $region39
        $region36: #{tpu_custom_call.1} parent=31 // loop_body
          %v64 = vld [vmem:[%s62] sm:%s55]
          %65 = vst [vmem:[%s63] sm:%s55] %v64
        $region37: #{tpu_custom_call.1} parent=31 // loop_footer
          %s61 = sadd.s32 1, %s57
        $region38: #{tpu_custom_call.1} parent=31 // loop_footer_branch
          %56 = sbr.rel target = $region34
        $region39: #{tpu_custom_call.1} parent=31 // loop_exit
          _
      $region32: #{tpu_custom_call.1} parent=16 // pred_fallthru
        _
    $region17: #{tpu_custom_call.1} parent=1 // pred_fallthru
      _
    // Predicated region
    $region18: #{tpu_custom_call.1} parent=1 // pred_check
      %p31 = pneg %p27
    $region19: #{tpu_custom_call.1} parent=1 // pred_check_branch
      %33 = sbr.rel (%p31) target = $region21
    $region20: #{tpu_custom_call.1} parent=1 // pred_region
      %s34 = sshllo.u32 0, 1
      loop: start=0, step=1, limit=1
      $region22: #{tpu_custom_call.1} parent=20 // loop_pre_header
        _
      $region23: #{tpu_custom_call.1} parent=20 // loop_header
        %s36 = sphi 0, %s40
        %p37 = scmp.ge.s32.totalorder %s36, 1
        %s41 = sphi %s25, %s25
        %s42 = sphi [#allocation2], [#allocation2]
      $region24: #{tpu_custom_call.1} parent=20 // loop_header_branch
        %39 = sbr.rel (%p37) target = $region28
      $region25: #{tpu_custom_call.1} parent=20 // loop_body
        %v43 = vld [vmem:[%s41] sm:%s34]
        %44 = vst [vmem:[%s42] sm:%s34] %v43
      $region26: #{tpu_custom_call.1} parent=20 // loop_footer
        %s40 = sadd.s32 1, %s36
      $region27: #{tpu_custom_call.1} parent=20 // loop_footer_branch
        %35 = sbr.rel target = $region23
      $region28: #{tpu_custom_call.1} parent=20 // loop_exit
        _
    $region21: #{tpu_custom_call.1} parent=1 // pred_fallthru
      _
    // Predicated region
    $region40: #{tpu_custom_call.1} parent=1 // pred_check
      _
    $region41: #{tpu_custom_call.1} parent=1 // pred_check_branch
      %68 = sbr.rel (0) target = $region43
    $region42: #{tpu_custom_call.1} parent=1 // pred_region
      %69 = vsyncadd [#allocation3], 16
    $region43: #{tpu_custom_call.1} parent=1 // pred_fallthru
      _
    %s70 = sadd.s32 %s23, 1
    %s71 = sld [smem:[#allocation5 + %s70]]
    %s72 = scalar_lea.vmem %s1, %s71
    %s73 = scalar_lea.vmem [#allocation2], 1
    %s74 = scalar_lea.sflag [#allocation3], 1
    %p76 = scmp.lt.u32.totalorder 1, 8
    %p77 = pneg %p76
    // Predicated region
    $region44: #{tpu_custom_call.1} parent=1 // pred_check
      _
    $region45: #{tpu_custom_call.1} parent=1 // pred_check_branch
      %79 = sbr.rel (%p76) target = $region47
    $region46: #{tpu_custom_call.1} parent=1 // pred_region
      %s94 = sand.u32 1, 7
      %p95 = scmp.eq.s32.totalorder %s94, 0
      %p96 = pneg %p95
      // Predicated region
      $region59: #{tpu_custom_call.1} parent=46 // pred_check
        _
      $region60: #{tpu_custom_call.1} parent=46 // pred_check_branch
        %98 = sbr.rel (%p95) target = $region62
      $region61: #{tpu_custom_call.1} parent=46 // pred_region
        %s99 = sand.u32 1, 7
        %s100 = ssub.s32 1, %s99
        %s101 = scalar_lea.vmem %s72, %s100
        %s102 = ssub.s32 1, %s99
        %s103 = scalar_lea.vmem %s73, %s102 [#allocation2]
        %s104 = sshllo.u32 0, %s99
        loop: start=0, step=1, limit=1
        $region63: #{tpu_custom_call.1} parent=61 // loop_pre_header
          _
        $region64: #{tpu_custom_call.1} parent=61 // loop_header
          %s106 = sphi 0, %s110
          %p107 = scmp.ge.s32.totalorder %s106, 1
          %s111 = sphi %s101, %s101
          %s112 = sphi %s103, %s103
        $region65: #{tpu_custom_call.1} parent=61 // loop_header_branch
          %109 = sbr.rel (%p107) target = $region69
        $region66: #{tpu_custom_call.1} parent=61 // loop_body
          %v113 = vld [vmem:[%s111] sm:%s104]
          %114 = vst [vmem:[%s112] sm:%s104] %v113
        $region67: #{tpu_custom_call.1} parent=61 // loop_footer
          %s110 = sadd.s32 1, %s106
        $region68: #{tpu_custom_call.1} parent=61 // loop_footer_branch
          %105 = sbr.rel target = $region64
        $region69: #{tpu_custom_call.1} parent=61 // loop_exit
          _
      $region62: #{tpu_custom_call.1} parent=46 // pred_fallthru
        _
    $region47: #{tpu_custom_call.1} parent=1 // pred_fallthru
      _
    // Predicated region
    $region48: #{tpu_custom_call.1} parent=1 // pred_check
      %p80 = pneg %p76
    $region49: #{tpu_custom_call.1} parent=1 // pred_check_branch
      %82 = sbr.rel (%p80) target = $region51
    $region50: #{tpu_custom_call.1} parent=1 // pred_region
      %s83 = sshllo.u32 0, 1
      loop: start=0, step=1, limit=1
      $region52: #{tpu_custom_call.1} parent=50 // loop_pre_header
        _
      $region53: #{tpu_custom_call.1} parent=50 // loop_header
        %s85 = sphi 0, %s89
        %p86 = scmp.ge.s32.totalorder %s85, 1
        %s90 = sphi %s72, %s72
        %s91 = sphi %s73, %s73
      $region54: #{tpu_custom_call.1} parent=50 // loop_header_branch
        %88 = sbr.rel (%p86) target = $region58
      $region55: #{tpu_custom_call.1} parent=50 // loop_body
        %v92 = vld [vmem:[%s90] sm:%s83]
        %93 = vst [vmem:[%s91] sm:%s83] %v92
      $region56: #{tpu_custom_call.1} parent=50 // loop_footer
        %s89 = sadd.s32 1, %s85
      $region57: #{tpu_custom_call.1} parent=50 // loop_footer_branch
        %84 = sbr.rel target = $region53
      $region58: #{tpu_custom_call.1} parent=50 // loop_exit
        _
    $region51: #{tpu_custom_call.1} parent=1 // pred_fallthru
      _
    // Predicated region
    $region70: #{tpu_custom_call.1} parent=1 // pred_check
      _
    $region71: #{tpu_custom_call.1} parent=1 // pred_check_branch
      %117 = sbr.rel (0) target = $region73
    $region72: #{tpu_custom_call.1} parent=1 // pred_region
      %118 = vsyncadd %s74, 16
    $region73: #{tpu_custom_call.1} parent=1 // pred_fallthru
      _
    %s119 = sadd.s32 %s23, 2
    %s120 = sld [smem:[#allocation5 + %s119]]
    %s121 = scalar_lea.vmem %s1, %s120
    %s122 = scalar_lea.vmem [#allocation2], 2
    %s123 = scalar_lea.sflag [#allocation3], 2
    %p125 = scmp.lt.u32.totalorder 1, 8
    %p126 = pneg %p125
    // Predicated region
    $region74: #{tpu_custom_call.1} parent=1 // pred_check
      _
    $region75: #{tpu_custom_call.1} parent=1 // pred_check_branch
      %128 = sbr.rel (%p125) target = $region77
    $region76: #{tpu_custom_call.1} parent=1 // pred_region
      %s143 = sand.u32 1, 7
      %p144 = scmp.eq.s32.totalorder %s143, 0
      %p145 = pneg %p144
      // Predicated region
      $region89: #{tpu_custom_call.1} parent=76 // pred_check
        _
      $region90: #{tpu_custom_call.1} parent=76 // pred_check_branch
        %147 = sbr.rel (%p144) target = $region92
      $region91: #{tpu_custom_call.1} parent=76 // pred_region
        %s148 = sand.u32 1, 7
        %s149 = ssub.s32 1, %s148
        %s150 = scalar_lea.vmem %s121, %s149
        %s151 = ssub.s32 1, %s148
        %s152 = scalar_lea.vmem %s122, %s151 [#allocation2]
        %s153 = sshllo.u32 0, %s148
        loop: start=0, step=1, limit=1
        $region93: #{tpu_custom_call.1} parent=91 // loop_pre_header
          _
        $region94: #{tpu_custom_call.1} parent=91 // loop_header
          %s155 = sphi 0, %s159
          %p156 = scmp.ge.s32.totalorder %s155, 1
          %s160 = sphi %s150, %s150
          %s161 = sphi %s152, %s152
        $region95: #{tpu_custom_call.1} parent=91 // loop_header_branch
          %158 = sbr.rel (%p156) target = $region99
        $region96: #{tpu_custom_call.1} parent=91 // loop_body
          %v162 = vld [vmem:[%s160] sm:%s153]
          %163 = vst [vmem:[%s161] sm:%s153] %v162
        $region97: #{tpu_custom_call.1} parent=91 // loop_footer
          %s159 = sadd.s32 1, %s155
        $region98: #{tpu_custom_call.1} parent=91 // loop_footer_branch
          %154 = sbr.rel target = $region94
        $region99: #{tpu_custom_call.1} parent=91 // loop_exit
          _
      $region92: #{tpu_custom_call.1} parent=76 // pred_fallthru
        _
    $region77: #{tpu_custom_call.1} parent=1 // pred_fallthru
      _
    // Predicated region
    $region78: #{tpu_custom_call.1} parent=1 // pred_check
      %p129 = pneg %p125
    $region79: #{tpu_custom_call.1} parent=1 // pred_check_branch
      %131 = sbr.rel (%p129) target = $region81
    $region80: #{tpu_custom_call.1} parent=1 // pred_region
      %s132 = sshllo.u32 0, 1
      loop: start=0, step=1, limit=1
      $region82: #{tpu_custom_call.1} parent=80 // loop_pre_header
        _
      $region83: #{tpu_custom_call.1} parent=80 // loop_header
        %s134 = sphi 0, %s138
        %p135 = scmp.ge.s32.totalorder %s134, 1
        %s139 = sphi %s121, %s121
        %s140 = sphi %s122, %s122
      $region84: #{tpu_custom_call.1} parent=80 // loop_header_branch
        %137 = sbr.rel (%p135) target = $region88
      $region85: #{tpu_custom_call.1} parent=80 // loop_body
        %v141 = vld [vmem:[%s139] sm:%s132]
        %142 = vst [vmem:[%s140] sm:%s132] %v141
      $region86: #{tpu_custom_call.1} parent=80 // loop_footer
        %s138 = sadd.s32 1, %s134
      $region87: #{tpu_custom_call.1} parent=80 // loop_footer_branch
        %133 = sbr.rel target = $region83
      $region88: #{tpu_custom_call.1} parent=80 // loop_exit
        _
    $region81: #{tpu_custom_call.1} parent=1 // pred_fallthru
      _
    // Predicated region
    $region100: #{tpu_custom_call.1} parent=1 // pred_check
      _
    $region101: #{tpu_custom_call.1} parent=1 // pred_check_branch
      %166 = sbr.rel (0) target = $region103
    $region102: #{tpu_custom_call.1} parent=1 // pred_region
      %167 = vsyncadd %s123, 16
    $region103: #{tpu_custom_call.1} parent=1 // pred_fallthru
      _
    %s168 = sadd.s32 %s23, 3
    %s169 = sld [smem:[#allocation5 + %s168]]
    %s170 = scalar_lea.vmem %s1, %s169
    %s171 = scalar_lea.vmem [#allocation2], 3
    %s172 = scalar_lea.sflag [#allocation3], 3
    %p174 = scmp.lt.u32.totalorder 1, 8
    %p175 = pneg %p174
    // Predicated region
    $region104: #{tpu_custom_call.1} parent=1 // pred_check
      _
    $region105: #{tpu_custom_call.1} parent=1 // pred_check_branch
      %177 = sbr.rel (%p174) target = $region107
    $region106: #{tpu_custom_call.1} parent=1 // pred_region
      %s192 = sand.u32 1, 7
      %p193 = scmp.eq.s32.totalorder %s192, 0
      %p194 = pneg %p193
      // Predicated region
      $region119: #{tpu_custom_call.1} parent=106 // pred_check
        _
      $region120: #{tpu_custom_call.1} parent=106 // pred_check_branch
        %196 = sbr.rel (%p193) target = $region122
      $region121: #{tpu_custom_call.1} parent=106 // pred_region
        %s197 = sand.u32 1, 7
        %s198 = ssub.s32 1, %s197
        %s199 = scalar_lea.vmem %s170, %s198
        %s200 = ssub.s32 1, %s197
        %s201 = scalar_lea.vmem %s171, %s200 [#allocation2]
        %s202 = sshllo.u32 0, %s197
        loop: start=0, step=1, limit=1
        $region123: #{tpu_custom_call.1} parent=121 // loop_pre_header
          _
        $region124: #{tpu_custom_call.1} parent=121 // loop_header
          %s204 = sphi 0, %s208
          %p205 = scmp.ge.s32.totalorder %s204, 1
          %s209 = sphi %s199, %s199
          %s210 = sphi %s201, %s201
        $region125: #{tpu_custom_call.1} parent=121 // loop_header_branch
          %207 = sbr.rel (%p205) target = $region129
        $region126: #{tpu_custom_call.1} parent=121 // loop_body
          %v211 = vld [vmem:[%s209] sm:%s202]
          %212 = vst [vmem:[%s210] sm:%s202] %v211
        $region127: #{tpu_custom_call.1} parent=121 // loop_footer
          %s208 = sadd.s32 1, %s204
        $region128: #{tpu_custom_call.1} parent=121 // loop_footer_branch
          %203 = sbr.rel target = $region124
        $region129: #{tpu_custom_call.1} parent=121 // loop_exit
          _
      $region122: #{tpu_custom_call.1} parent=106 // pred_fallthru
        _
    $region107: #{tpu_custom_call.1} parent=1 // pred_fallthru
      _
    // Predicated region
    $region108: #{tpu_custom_call.1} parent=1 // pred_check
      %p178 = pneg %p174
    $region109: #{tpu_custom_call.1} parent=1 // pred_check_branch
      %180 = sbr.rel (%p178) target = $region111
    $region110: #{tpu_custom_call.1} parent=1 // pred_region
      %s181 = sshllo.u32 0, 1
      loop: start=0, step=1, limit=1
      $region112: #{tpu_custom_call.1} parent=110 // loop_pre_header
        _
      $region113: #{tpu_custom_call.1} parent=110 // loop_header
        %s183 = sphi 0, %s187
        %p184 = scmp.ge.s32.totalorder %s183, 1
        %s188 = sphi %s170, %s170
        %s189 = sphi %s171, %s171
      $region114: #{tpu_custom_call.1} parent=110 // loop_header_branch
        %186 = sbr.rel (%p184) target = $region118
      $region115: #{tpu_custom_call.1} parent=110 // loop_body
        %v190 = vld [vmem:[%s188] sm:%s181]
        %191 = vst [vmem:[%s189] sm:%s181] %v190
      $region116: #{tpu_custom_call.1} parent=110 // loop_footer
        %s187 = sadd.s32 1, %s183
      $region117: #{tpu_custom_call.1} parent=110 // loop_footer_branch
        %182 = sbr.rel target = $region113
      $region118: #{tpu_custom_call.1} parent=110 // loop_exit
        _
    $region111: #{tpu_custom_call.1} parent=1 // pred_fallthru
      _
    // Predicated region
    $region130: #{tpu_custom_call.1} parent=1 // pred_check
      _
    $region131: #{tpu_custom_call.1} parent=1 // pred_check_branch
      %215 = sbr.rel (0) target = $region133
    $region132: #{tpu_custom_call.1} parent=1 // pred_region
      %216 = vsyncadd %s172, 16
    $region133: #{tpu_custom_call.1} parent=1 // pred_fallthru
      _
    %s217 = sadd.s32 %s23, 4
    %s218 = sld [smem:[#allocation5 + %s217]]
    %s219 = scalar_lea.vmem %s1, %s218
    %s220 = scalar_lea.vmem [#allocation2], 4
    %s221 = scalar_lea.sflag [#allocation3], 4
    %p223 = scmp.lt.u32.totalorder 1, 8
    %p224 = pneg %p223
    // Predicated region
    $region134: #{tpu_custom_call.1} parent=1 // pred_check
      _
    $region135: #{tpu_custom_call.1} parent=1 // pred_check_branch
      %226 = sbr.rel (%p223) target = $region137
    $region136: #{tpu_custom_call.1} parent=1 // pred_region
      %s241 = sand.u32 1, 7
      %p242 = scmp.eq.s32.totalorder %s241, 0
      %p243 = pneg %p242
      // Predicated region
      $region149: #{tpu_custom_call.1} parent=136 // pred_check
        _
      $region150: #{tpu_custom_call.1} parent=136 // pred_check_branch
        %245 = sbr.rel (%p242) target = $region152
      $region151: #{tpu_custom_call.1} parent=136 // pred_region
        %s246 = sand.u32 1, 7
        %s247 = ssub.s32 1, %s246
        %s248 = scalar_lea.vmem %s219, %s247
        %s249 = ssub.s32 1, %s246
        %s250 = scalar_lea.vmem %s220, %s249 [#allocation2]
        %s251 = sshllo.u32 0, %s246
        loop: start=0, step=1, limit=1
        $region153: #{tpu_custom_call.1} parent=151 // loop_pre_header
          _
        $region154: #{tpu_custom_call.1} parent=151 // loop_header
          %s253 = sphi 0, %s257
          %p254 = scmp.ge.s32.totalorder %s253, 1
          %s258 = sphi %s248, %s248
          %s259 = sphi %s250, %s250
        $region155: #{tpu_custom_call.1} parent=151 // loop_header_branch
          %256 = sbr.rel (%p254) target = $region159
        $region156: #{tpu_custom_call.1} parent=151 // loop_body
          %v260 = vld [vmem:[%s258] sm:%s251]
          %261 = vst [vmem:[%s259] sm:%s251] %v260
        $region157: #{tpu_custom_call.1} parent=151 // loop_footer
          %s257 = sadd.s32 1, %s253
        $region158: #{tpu_custom_call.1} parent=151 // loop_footer_branch
          %252 = sbr.rel target = $region154
        $region159: #{tpu_custom_call.1} parent=151 // loop_exit
          _
      $region152: #{tpu_custom_call.1} parent=136 // pred_fallthru
        _
    $region137: #{tpu_custom_call.1} parent=1 // pred_fallthru
      _
    // Predicated region
    $region138: #{tpu_custom_call.1} parent=1 // pred_check
      %p227 = pneg %p223
    $region139: #{tpu_custom_call.1} parent=1 // pred_check_branch
      %229 = sbr.rel (%p227) target = $region141
    $region140: #{tpu_custom_call.1} parent=1 // pred_region
      %s230 = sshllo.u32 0, 1
      loop: start=0, step=1, limit=1
      $region142: #{tpu_custom_call.1} parent=140 // loop_pre_header
        _
      $region143: #{tpu_custom_call.1} parent=140 // loop_header
        %s232 = sphi 0, %s236
        %p233 = scmp.ge.s32.totalorder %s232, 1
        %s237 = sphi %s219, %s219
        %s238 = sphi %s220, %s220
      $region144: #{tpu_custom_call.1} parent=140 // loop_header_branch
        %235 = sbr.rel (%p233) target = $region148
      $region145: #{tpu_custom_call.1} parent=140 // loop_body
        %v239 = vld [vmem:[%s237] sm:%s230]
        %240 = vst [vmem:[%s238] sm:%s230] %v239
      $region146: #{tpu_custom_call.1} parent=140 // loop_footer
        %s236 = sadd.s32 1, %s232
      $region147: #{tpu_custom_call.1} parent=140 // loop_footer_branch
        %231 = sbr.rel target = $region143
      $region148: #{tpu_custom_call.1} parent=140 // loop_exit
        _
    $region141: #{tpu_custom_call.1} parent=1 // pred_fallthru
      _
    // Predicated region
    $region160: #{tpu_custom_call.1} parent=1 // pred_check
      _
    $region161: #{tpu_custom_call.1} parent=1 // pred_check_branch
      %264 = sbr.rel (0) target = $region163
    $region162: #{tpu_custom_call.1} parent=1 // pred_region
      %265 = vsyncadd %s221, 16
    $region163: #{tpu_custom_call.1} parent=1 // pred_fallthru
      _
    %s266 = sadd.s32 %s23, 5
    %s267 = sld [smem:[#allocation5 + %s266]]
    %s268 = scalar_lea.vmem %s1, %s267
    %s269 = scalar_lea.vmem [#allocation2], 5
    %s270 = scalar_lea.sflag [#allocation3], 5
    %p272 = scmp.lt.u32.totalorder 1, 8
    %p273 = pneg %p272
    // Predicated region
    $region164: #{tpu_custom_call.1} parent=1 // pred_check
      _
    $region165: #{tpu_custom_call.1} parent=1 // pred_check_branch
      %275 = sbr.rel (%p272) target = $region167
    $region166: #{tpu_custom_call.1} parent=1 // pred_region
      %s290 = sand.u32 1, 7
      %p291 = scmp.eq.s32.totalorder %s290, 0
      %p292 = pneg %p291
      // Predicated region
      $region179: #{tpu_custom_call.1} parent=166 // pred_check
        _
      $region180: #{tpu_custom_call.1} parent=166 // pred_check_branch
        %294 = sbr.rel (%p291) target = $region182
      $region181: #{tpu_custom_call.1} parent=166 // pred_region
        %s295 = sand.u32 1, 7
        %s296 = ssub.s32 1, %s295
        %s297 = scalar_lea.vmem %s268, %s296
        %s298 = ssub.s32 1, %s295
        %s299 = scalar_lea.vmem %s269, %s298 [#allocation2]
        %s300 = sshllo.u32 0, %s295
        loop: start=0, step=1, limit=1
        $region183: #{tpu_custom_call.1} parent=181 // loop_pre_header
          _
        $region184: #{tpu_custom_call.1} parent=181 // loop_header
          %s302 = sphi 0, %s306
          %p303 = scmp.ge.s32.totalorder %s302, 1
          %s307 = sphi %s297, %s297
          %s308 = sphi %s299, %s299
        $region185: #{tpu_custom_call.1} parent=181 // loop_header_branch
          %305 = sbr.rel (%p303) target = $region189
        $region186: #{tpu_custom_call.1} parent=181 // loop_body
          %v309 = vld [vmem:[%s307] sm:%s300]
          %310 = vst [vmem:[%s308] sm:%s300] %v309
        $region187: #{tpu_custom_call.1} parent=181 // loop_footer
          %s306 = sadd.s32 1, %s302
        $region188: #{tpu_custom_call.1} parent=181 // loop_footer_branch
          %301 = sbr.rel target = $region184
        $region189: #{tpu_custom_call.1} parent=181 // loop_exit
          _
      $region182: #{tpu_custom_call.1} parent=166 // pred_fallthru
        _
    $region167: #{tpu_custom_call.1} parent=1 // pred_fallthru
      _
    // Predicated region
    $region168: #{tpu_custom_call.1} parent=1 // pred_check
      %p276 = pneg %p272
    $region169: #{tpu_custom_call.1} parent=1 // pred_check_branch
      %278 = sbr.rel (%p276) target = $region171
    $region170: #{tpu_custom_call.1} parent=1 // pred_region
      %s279 = sshllo.u32 0, 1
      loop: start=0, step=1, limit=1
      $region172: #{tpu_custom_call.1} parent=170 // loop_pre_header
        _
      $region173: #{tpu_custom_call.1} parent=170 // loop_header
        %s281 = sphi 0, %s285
        %p282 = scmp.ge.s32.totalorder %s281, 1
        %s286 = sphi %s268, %s268
        %s287 = sphi %s269, %s269
      $region174: #{tpu_custom_call.1} parent=170 // loop_header_branch
        %284 = sbr.rel (%p282) target = $region178
      $region175: #{tpu_custom_call.1} parent=170 // loop_body
        %v288 = vld [vmem:[%s286] sm:%s279]
        %289 = vst [vmem:[%s287] sm:%s279] %v288
      $region176: #{tpu_custom_call.1} parent=170 // loop_footer
        %s285 = sadd.s32 1, %s281
      $region177: #{tpu_custom_call.1} parent=170 // loop_footer_branch
        %280 = sbr.rel target = $region173
      $region178: #{tpu_custom_call.1} parent=170 // loop_exit
        _
    $region171: #{tpu_custom_call.1} parent=1 // pred_fallthru
      _
    // Predicated region
    $region190: #{tpu_custom_call.1} parent=1 // pred_check
      _
    $region191: #{tpu_custom_call.1} parent=1 // pred_check_branch
      %313 = sbr.rel (0) target = $region193
    $region192: #{tpu_custom_call.1} parent=1 // pred_region
      %314 = vsyncadd %s270, 16
    $region193: #{tpu_custom_call.1} parent=1 // pred_fallthru
      _
    %s315 = sadd.s32 %s23, 6
    %s316 = sld [smem:[#allocation5 + %s315]]
    %s317 = scalar_lea.vmem %s1, %s316
    %s318 = scalar_lea.vmem [#allocation2], 6
    %s319 = scalar_lea.sflag [#allocation3], 6
    %p321 = scmp.lt.u32.totalorder 1, 8
    %p322 = pneg %p321
    // Predicated region
    $region194: #{tpu_custom_call.1} parent=1 // pred_check
      _
    $region195: #{tpu_custom_call.1} parent=1 // pred_check_branch
      %324 = sbr.rel (%p321) target = $region197
    $region196: #{tpu_custom_call.1} parent=1 // pred_region
      %s339 = sand.u32 1, 7
      %p340 = scmp.eq.s32.totalorder %s339, 0
      %p341 = pneg %p340
      // Predicated region
      $region209: #{tpu_custom_call.1} parent=196 // pred_check
        _
      $region210: #{tpu_custom_call.1} parent=196 // pred_check_branch
        %343 = sbr.rel (%p340) target = $region212
      $region211: #{tpu_custom_call.1} parent=196 // pred_region
        %s344 = sand.u32 1, 7
        %s345 = ssub.s32 1, %s344
        %s346 = scalar_lea.vmem %s317, %s345
        %s347 = ssub.s32 1, %s344
        %s348 = scalar_lea.vmem %s318, %s347 [#allocation2]
        %s349 = sshllo.u32 0, %s344
        loop: start=0, step=1, limit=1
        $region213: #{tpu_custom_call.1} parent=211 // loop_pre_header
          _
        $region214: #{tpu_custom_call.1} parent=211 // loop_header
          %s351 = sphi 0, %s355
          %p352 = scmp.ge.s32.totalorder %s351, 1
          %s356 = sphi %s346, %s346
          %s357 = sphi %s348, %s348
        $region215: #{tpu_custom_call.1} parent=211 // loop_header_branch
          %354 = sbr.rel (%p352) target = $region219
        $region216: #{tpu_custom_call.1} parent=211 // loop_body
          %v358 = vld [vmem:[%s356] sm:%s349]
          %359 = vst [vmem:[%s357] sm:%s349] %v358
        $region217: #{tpu_custom_call.1} parent=211 // loop_footer
          %s355 = sadd.s32 1, %s351
        $region218: #{tpu_custom_call.1} parent=211 // loop_footer_branch
          %350 = sbr.rel target = $region214
        $region219: #{tpu_custom_call.1} parent=211 // loop_exit
          _
      $region212: #{tpu_custom_call.1} parent=196 // pred_fallthru
        _
    $region197: #{tpu_custom_call.1} parent=1 // pred_fallthru
      _
    // Predicated region
    $region198: #{tpu_custom_call.1} parent=1 // pred_check
      %p325 = pneg %p321
    $region199: #{tpu_custom_call.1} parent=1 // pred_check_branch
      %327 = sbr.rel (%p325) target = $region201
    $region200: #{tpu_custom_call.1} parent=1 // pred_region
      %s328 = sshllo.u32 0, 1
      loop: start=0, step=1, limit=1
      $region202: #{tpu_custom_call.1} parent=200 // loop_pre_header
        _
      $region203: #{tpu_custom_call.1} parent=200 // loop_header
        %s330 = sphi 0, %s334
        %p331 = scmp.ge.s32.totalorder %s330, 1
        %s335 = sphi %s317, %s317
        %s336 = sphi %s318, %s318
      $region204: #{tpu_custom_call.1} parent=200 // loop_header_branch
        %333 = sbr.rel (%p331) target = $region208
      $region205: #{tpu_custom_call.1} parent=200 // loop_body
        %v337 = vld [vmem:[%s335] sm:%s328]
        %338 = vst [vmem:[%s336] sm:%s328] %v337
      $region206: #{tpu_custom_call.1} parent=200 // loop_footer
        %s334 = sadd.s32 1, %s330
      $region207: #{tpu_custom_call.1} parent=200 // loop_footer_branch
        %329 = sbr.rel target = $region203
      $region208: #{tpu_custom_call.1} parent=200 // loop_exit
        _
    $region201: #{tpu_custom_call.1} parent=1 // pred_fallthru
      _
    // Predicated region
    $region220: #{tpu_custom_call.1} parent=1 // pred_check
      _
    $region221: #{tpu_custom_call.1} parent=1 // pred_check_branch
      %362 = sbr.rel (0) target = $region223
    $region222: #{tpu_custom_call.1} parent=1 // pred_region
      %363 = vsyncadd %s319, 16
    $region223: #{tpu_custom_call.1} parent=1 // pred_fallthru
      _
    %s364 = sadd.s32 %s23, 7
    %s365 = sld [smem:[#allocation5 + %s364]]
    %s366 = scalar_lea.vmem %s1, %s365
    %s367 = scalar_lea.vmem [#allocation2], 7
    %s368 = scalar_lea.sflag [#allocation3], 7
    %p370 = scmp.lt.u32.totalorder 1, 8
    %p371 = pneg %p370
    // Predicated region
    $region224: #{tpu_custom_call.1} parent=1 // pred_check
      _
    $region225: #{tpu_custom_call.1} parent=1 // pred_check_branch
      %373 = sbr.rel (%p370) target = $region227
    $region226: #{tpu_custom_call.1} parent=1 // pred_region
      %s388 = sand.u32 1, 7
      %p389 = scmp.eq.s32.totalorder %s388, 0
      %p390 = pneg %p389
      // Predicated region
      $region239: #{tpu_custom_call.1} parent=226 // pred_check
        _
      $region240: #{tpu_custom_call.1} parent=226 // pred_check_branch
        %392 = sbr.rel (%p389) target = $region242
      $region241: #{tpu_custom_call.1} parent=226 // pred_region
        %s393 = sand.u32 1, 7
        %s394 = ssub.s32 1, %s393
        %s395 = scalar_lea.vmem %s366, %s394
        %s396 = ssub.s32 1, %s393
        %s397 = scalar_lea.vmem %s367, %s396 [#allocation2]
        %s398 = sshllo.u32 0, %s393
        loop: start=0, step=1, limit=1
        $region243: #{tpu_custom_call.1} parent=241 // loop_pre_header
          _
        $region244: #{tpu_custom_call.1} parent=241 // loop_header
          %s400 = sphi 0, %s404
          %p401 = scmp.ge.s32.totalorder %s400, 1
          %s405 = sphi %s395, %s395
          %s406 = sphi %s397, %s397
        $region245: #{tpu_custom_call.1} parent=241 // loop_header_branch
          %403 = sbr.rel (%p401) target = $region249
        $region246: #{tpu_custom_call.1} parent=241 // loop_body
          %v407 = vld [vmem:[%s405] sm:%s398]
          %408 = vst [vmem:[%s406] sm:%s398] %v407
        $region247: #{tpu_custom_call.1} parent=241 // loop_footer
          %s404 = sadd.s32 1, %s400
        $region248: #{tpu_custom_call.1} parent=241 // loop_footer_branch
          %399 = sbr.rel target = $region244
        $region249: #{tpu_custom_call.1} parent=241 // loop_exit
          _
      $region242: #{tpu_custom_call.1} parent=226 // pred_fallthru
        _
    $region227: #{tpu_custom_call.1} parent=1 // pred_fallthru
      _
    // Predicated region
    $region228: #{tpu_custom_call.1} parent=1 // pred_check
      %p374 = pneg %p370
    $region229: #{tpu_custom_call.1} parent=1 // pred_check_branch
      %376 = sbr.rel (%p374) target = $region231
    $region230: #{tpu_custom_call.1} parent=1 // pred_region
      %s377 = sshllo.u32 0, 1
      loop: start=0, step=1, limit=1
      $region232: #{tpu_custom_call.1} parent=230 // loop_pre_header
        _
      $region233: #{tpu_custom_call.1} parent=230 // loop_header
        %s379 = sphi 0, %s383
        %p380 = scmp.ge.s32.totalorder %s379, 1
        %s384 = sphi %s366, %s366
        %s385 = sphi %s367, %s367
      $region234: #{tpu_custom_call.1} parent=230 // loop_header_branch
        %382 = sbr.rel (%p380) target = $region238
      $region235: #{tpu_custom_call.1} parent=230 // loop_body
        %v386 = vld [vmem:[%s384] sm:%s377]
        %387 = vst [vmem:[%s385] sm:%s377] %v386
      $region236: #{tpu_custom_call.1} parent=230 // loop_footer
        %s383 = sadd.s32 1, %s379
      $region237: #{tpu_custom_call.1} parent=230 // loop_footer_branch
        %378 = sbr.rel target = $region233
      $region238: #{tpu_custom_call.1} parent=230 // loop_exit
        _
    $region231: #{tpu_custom_call.1} parent=1 // pred_fallthru
      _
    // Predicated region
    $region250: #{tpu_custom_call.1} parent=1 // pred_check
      _
    $region251: #{tpu_custom_call.1} parent=1 // pred_check_branch
      %411 = sbr.rel (0) target = $region253
    $region252: #{tpu_custom_call.1} parent=1 // pred_region
      %412 = vsyncadd %s368, 16
    $region253: #{tpu_custom_call.1} parent=1 // pred_fallthru
      _
    %s413 = smul.u32 1, 1
    %s414 = sshll.u32 %s413, 4
    %415 = dma.done [#allocation3], %s414
    %s416 = sshll.u32 %s413, 4
    %417 = dma.done %s74, %s416
    %s418 = sshll.u32 %s413, 4
    %419 = dma.done %s123, %s418
    %s420 = sshll.u32 %s413, 4
    %421 = dma.done %s172, %s420
    %s422 = sshll.u32 %s413, 4
    %423 = dma.done %s221, %s422
    %s424 = sshll.u32 %s413, 4
    %425 = dma.done %s270, %s424
    %s426 = sshll.u32 %s413, 4
    %427 = dma.done %s319, %s426
    %s428 = sshll.u32 %s413, 4
    %429 = dma.done %s368, %s428
    %v430 = vld [vmem:[#allocation2] sm:$0xff]
    %v431 = vld [vmem:[%s3] sm:$0xff]
    %v432 = vld [vmem:[%s3 + $0x8] sm:$0xff]
    %v433 = vld [vmem:[%s3 + $0x10] sm:$0xff]
    %v434 = vld [vmem:[%s3 + $0x18] sm:$0xff]
    %v435 = vld [vmem:[%s4] sm:$0x1]
    %v437 = vlaneseq
    %v438 = vshrl.u32 %v437, 7
    %v439 = vsub.s32 0, %v438
    %v440 = vrot.slane %v435, %v439
    %vm442 = vcmask 261120
    %v444 = vsel %vm442, %v430, 0
    %446 = vmatprep.subr.mxu0 0.0
    %447 = vmatpush1.msra.mxu0 %v431
    %448 = vmatprep.subr.mxu0 0.0
    %449 = vmatpush1.msra.mxu0 %v432
    %450 = vmatprep.subr.mxu0 0.0
    %451 = vmatpush1.msra.mxu0 %v433
    %452 = vmatprep.subr.mxu0 0.0
    %453 = vmatpush1.msra.mxu0 %v434
    %454 = vmatprep.subr.mxu0 0.0
    %455 = vmatpush1.msra.mxu0 0.0
    %456 = vmatprep.subr.mxu0 0.0
    %457 = vmatpush1.msra.mxu0 0.0
    %458 = vmatprep.subr.mxu0 0.0
    %459 = vmatpush1.msra.mxu0 0.0
    %460 = vmatprep.subr.mxu0 0.0
    %461 = vmatpush1.msra.mxu0 0.0
    %462 = vmatprep.subr.mxu0 0.0
    %463 = vmatpush1.msra.mxu0 0.0
    %464 = vmatprep.subr.mxu0 0.0
    %465 = vmatpush1.msra.mxu0 0.0
    %466 = vmatprep.subr.mxu0 0.0
    %467 = vmatpush1.msra.mxu0 0.0
    %468 = vmatprep.subr.mxu0 0.0
    %469 = vmatpush1.msra.mxu0 0.0
    %470 = vmatprep.subr.mxu0 0.0
    %471 = vmatpush1.msra.mxu0 0.0
    %472 = vmatprep.subr.mxu0 0.0
    %473 = vmatpush1.msra.mxu0 0.0
    %474 = vmatprep.subr.mxu0 0.0
    %475 = vmatpush1.msra.mxu0 0.0
    %476 = vmatprep.subr.mxu0 0.0
    %477 = vmatpush1.msra.mxu0 0.0
    %478 = vmatprep.subr.mxu0 0.0
    %479 = vmatpush1.msra.mxu0 0.0
    %480 = vmatprep.subr.mxu0 0.0
    %481 = vmatpush1.msra.mxu0 0.0
    %482 = vmatprep.subr.mxu0 0.0
    %483 = vmatpush1.msra.mxu0 0.0
    %484 = vmatprep.subr.mxu0 0.0
    %485 = vmatpush1.msra.mxu0 0.0
    %486 = vmatprep.subr.mxu0 0.0
    %487 = vmatpush1.msra.mxu0 0.0
    %488 = vmatprep.subr.mxu0 0.0
    %489 = vmatpush1.msra.mxu0 0.0
    %490 = vmatprep.subr.mxu0 0.0
    %491 = vmatpush1.msra.mxu0 0.0
    %492 = vmatprep.subr.mxu0 0.0
    %493 = vmatpush1.msra.mxu0 0.0
    %494 = vmatprep.subr.mxu0 0.0
    %495 = vmatpush1.msra.mxu0 0.0
    %496 = vmatprep.subr.mxu0 0.0
    %497 = vmatpush1.msra.mxu0 0.0
    %498 = vmatprep.subr.mxu0 0.0
    %499 = vmatpush1.msra.mxu0 0.0
    %500 = vmatprep.subr.mxu0 0.0
    %501 = vmatpush1.msra.mxu0 0.0
    %502 = vmatprep.subr.mxu0 0.0
    %503 = vmatpush1.msra.mxu0 0.0
    %504 = vmatprep.subr.mxu0 0.0
    %505 = vmatpush1.msra.mxu0 0.0
    %506 = vmatprep.subr.mxu0 0.0
    %507 = vmatpush1.msra.mxu0 0.0
    %508 = vmatprep.subr.mxu0 0.0
    %509 = vmatpush1.msra.mxu0 0.0
    %510 = vmatprep.mubr.f32.mxu0 0.0
    %511 = vmatmul.mubr.f32.gmra.mrb[0].mxu0 %v444
    %v512 = vpop.f32.mrb[0].mxu0
    %v513 = vadd.f32 %v440, %v512
    %v514 = vpop.f32.mrb[0].mxu0
    %515 = vdwg.mxu0
    %vm516 = vcmask 15360
    %v517 = vsel %vm516, %v513, -inf
    %518 = vmax.xlane.f32.xlu0 %v517
    %v519 = vpop.xlane.xlu0 %518
    %v520 = vsub.f32 %v513, %v519
    %v521 = vmul.f32 %v520, 1.442695
    %v522 = vpow.pop %v521
    %v523 = vsel %vm516, %v522, 0.0
    %524 = vadd.xlane.f32.xlu0 %v523
    %v525 = vpop.xlane.xlu0 %524
    %v526 = vrcp.pop %v525
    %v527 = vmul.f32 %v522, %v526
    %v528 = vlog2.pop %v525
    %v529 = vmul.f32 %v528, 0.6931472
    %v530 = vadd.f32 %v519, %v529
    %v531 = vld [vmem:[%s2] sm:$0xff]
    %v532 = vlaneseq
    %v533 = vand.u32 %v532, 127
    %534 = vset.pattern.permute.xlu0 0
    %535 = vperm.xlu0 %534, %v531
    %v536 = vpop.permute.xlu0 %535
    %vm537 = vcmp.eq.s32.totalorder %v533, %v536
    %v538 = vsel %vm537, 1, 0
    %v539 = vcvt.s32.f32 %v538
    %v540 = vmul.f32 %v539, %v513
    %v541 = vsel %vm516, %v540, 0.0
    %542 = vadd.xlane.f32.xlu0 %v541
    %v543 = vpop.xlane.xlu0 %542
    %v544 = vsub.f32 %v530, %v543
    %vm545 = vcmp.eq.s32.totalorder %v533, 0
    %vm546 = vcmp.eq.s32.totalorder %v533, 1
    %vm547 = vcmp.eq.s32.totalorder %v533, 2
    %v548 = vsel %vm547, %v544, 0.0
    %550 = vset.pattern.permute.xlu0 1
    %551 = vperm.xlu0 %550, %v527
    %v552 = vpop.permute.xlu0 %551
    %v554 = vsel %vm546, %v552, %v548
    %555 = vset.pattern.permute.xlu0 0
    %556 = vperm.xlu0 %555, %v527
    %v557 = vpop.permute.xlu0 %556
    %v559 = vsel %vm545, %v557, %v554
    %560 = vst [vmem:[#allocation6] sm:$0xff] %v559
    // Predicated region
    $region254: #{tpu_custom_call.1} parent=1 // pred_check
      _
    $region255: #{tpu_custom_call.1} parent=1 // pred_check_branch
      %562 = sbr.rel (0) target = $region257
    $region256: #{tpu_custom_call.1} parent=1 // pred_region
      %s564 = ssub.s32 128, 128
      %565 = vsyncadd [#allocation7], %s564
      %s567 = sshll.u32 [#allocation6], 4
      %s568 = int_to_ptr.vmem [resolvable:$true] %s567
      %570 = dma.vmem_to_hbm [thread:$0]  %s568, 128, %s5, [#allocation7]
    $region257: #{tpu_custom_call.1} parent=1 // pred_fallthru
      _
    // Predicated region
    $region258: #{tpu_custom_call.1} parent=1 // pred_check
      _
    $region259: #{tpu_custom_call.1} parent=1 // pred_check_branch
      %572 = sbr.rel (0) target = $region261
    $region260: #{tpu_custom_call.1} parent=1 // pred_region
      %573 = dma.done [#allocation7], 128
    $region261: #{tpu_custom_call.1} parent=1 // pred_fallthru
      _
    %574 = vsyncpa [#allocation7], 1
  %575 = vsyncmov [#allocation3]
  %s576 = vpop.sfrf %575
  %p577 = scmp.eq.s32.totalorder %s576, 0
  %p578 = pneg %p577
  %580 = shalt.err (%p578)
  %s581 = scalar_lea.sflag [#allocation3], 1
  %582 = vsyncmov %s581
  %s583 = vpop.sfrf %582
  %p584 = scmp.eq.s32.totalorder %s583, 0
  %p585 = pneg %p584
  %587 = shalt.err (%p585)
  %s588 = scalar_lea.sflag [#allocation3], 2
  %589 = vsyncmov %s588
  %s590 = vpop.sfrf %589
  %p591 = scmp.eq.s32.totalorder %s590, 0
  %p592 = pneg %p591
  %594 = shalt.err (%p592)
  %s595 = scalar_lea.sflag [#allocation3], 3
  %596 = vsyncmov %s595
  %s597 = vpop.sfrf %596
  %p598 = scmp.eq.s32.totalorder %s597, 0
  %p599 = pneg %p598
  %601 = shalt.err (%p599)
  %s602 = scalar_lea.sflag [#allocation3], 4
  %603 = vsyncmov %s602
  %s604 = vpop.sfrf %603
  %p605 = scmp.eq.s32.totalorder %s604, 0
  %p606 = pneg %p605
  %608 = shalt.err (%p606)
  %s609 = scalar_lea.sflag [#allocation3], 5
  %610 = vsyncmov %s609
  %s611 = vpop.sfrf %610
  %p612 = scmp.eq.s32.totalorder %s611, 0
  %p613 = pneg %p612
  %615 = shalt.err (%p613)
  %s616 = scalar_lea.sflag [#allocation3], 6
  %617 = vsyncmov %s616
  %s618 = vpop.sfrf %617
  %p619 = scmp.eq.s32.totalorder %s618, 0
  %p620 = pneg %p619
  %622 = shalt.err (%p620)
  %s623 = scalar_lea.sflag [#allocation3], 7
  %624 = vsyncmov %s623
  %s625 = vpop.sfrf %624
  %p626 = scmp.eq.s32.totalorder %s625, 0
  %p627 = pneg %p626
  %629 = shalt.err (%p627)

</llo_original>
